<compile_context>
chip_gen: v7x
topology: tpu7x:2x2x1
jax: 0.10.0
libtpu: 0.0.40
codegen_flags: <defaults>
</compile_context>

<pallas_src>
import jax
import jax.numpy as jnp
from jax.experimental import pallas as pl
from jax.experimental.pallas import tpu as pltpu

_LANE = 128                 # vreg lane width (last dim)
_SUBLANE_BF16 = 16          # bf16 packs 16 rows per vreg; keep M tiles 16-aligned
_W_TILE_BYTES = 8 * 1024 * 1024   # cap for a single bf16 W (column-)tile buffer


def _round_up(x: int, m: int) -> int:
    return ((x + m - 1) // m) * m


def _feature_tiling(L: int):
    """Derive (K_pad, tile_n, N_pad) from the feature count L (deterministic,
    shared between param prep and the forward pass)."""
    K_pad = _round_up(L, _LANE)          # contraction dim (lane dim of x)
    full_n = _round_up(L, _LANE)         # padded output-feature dim
    if K_pad * full_n * 2 <= _W_TILE_BYTES:
        tile_n = full_n                  # W fully VMEM-resident in one tile
    else:
        # Stream W in column tiles; 256-wide keeps the 2x256x256 MXU (v6e/v7x) busy.
        tile_n = max(256, (_W_TILE_BYTES // (K_pad * 2)) // 256 * 256)
        tile_n = min(tile_n, full_n)
    N_pad = _round_up(L, tile_n)
    return K_pad, tile_n, N_pad


def _generator_kernel(x_ref, w_ref, b_ref, o_ref):
    # MXU matmul: bf16 operands, f32 accumulation.
    acc = jnp.dot(x_ref[...], w_ref[...], preferred_element_type=jnp.float32)
    acc = acc + b_ref[...]                       # (1, tile_n) broadcast over rows
    # sigmoid(z) = 0.5 * tanh(0.5 * z) + 0.5: one EUP transcendental per element.
    o_ref[...] = (0.5 * jnp.tanh(0.5 * acc) + 0.5).astype(o_ref.dtype)


def prepare_generator_params(w, b):
    """One-time layout prep for torch-layout params.

    w: (L, L) float32, nn.Linear layout (out_features, in_features)
    b: (L,)  float32
    Returns (w_t, b2d): zero-padded (in_pad, out_pad) bf16 weight and (1, out_pad)
    f32 bias, ready for generator_forward.  Padding is exact: padded K rows of W
    contribute 0 to real output columns; padded output columns are sliced off.
    """
    L = w.shape[0]
    assert w.shape == (L, L) and b.shape == (L,)
    K_pad, _, N_pad = _feature_tiling(L)
    w_t = jnp.pad(w.T, ((0, K_pad - L), (0, N_pad - L))).astype(jnp.bfloat16)
    b2d = jnp.pad(b, (0, N_pad - L)).reshape(1, N_pad).astype(jnp.float32)
    return w_t, b2d


def generator_forward(x, w_t, b2d):
    """Forward pass: sigmoid(x @ W^T + b).

    x:   (B, L) float32 (unpadded)
    w_t: padded bf16 weight from prepare_generator_params
    b2d: padded f32 bias   from prepare_generator_params
    returns: (B, L) float32
    """
    B, L = x.shape
    K_pad, tile_n, N_pad = _feature_tiling(L)
    assert w_t.shape == (K_pad, N_pad) and b2d.shape == (1, N_pad)

    # Balanced M tiles: target ~512-row tiles, but split >= 2 ways for B >= 128
    # so both TensorCores get work on v7x (neutral on 1-TC v5e/v6e).
    grid_m = max(pl.cdiv(B, 512), 2 if B >= 128 else 1)
    tile_m = _round_up(pl.cdiv(B, grid_m), _SUBLANE_BF16)
    B_pad = grid_m * tile_m
    grid_n = N_pad // tile_n

    x_p = jnp.pad(x, ((0, B_pad - B), (0, K_pad - L))).astype(jnp.bfloat16)

    # W / bias index_maps are constant across the grid when grid_n == 1, so a
    # single VMEM buffer suffices (halves the dominant VMEM allocation).
    if grid_n == 1:
        w_bufs = 1
        w_spec = pl.BlockSpec((K_pad, tile_n), lambda i, j: (0, j),
                              pipeline_mode=pl.Buffered(1))
        b_spec = pl.BlockSpec((1, tile_n), lambda i, j: (0, j),
                              pipeline_mode=pl.Buffered(1))
    else:
        w_bufs = 2   # N-tiled W streams column blocks -> keep default double-buffering
        w_spec = pl.BlockSpec((K_pad, tile_n), lambda i, j: (0, j))
        b_spec = pl.BlockSpec((1, tile_n), lambda i, j: (0, j))

    # Explicit scoped-VMEM budget from the actual buffer sizes (+headroom),
    # capped at v7x's 64 MiB physical VMEM.
    bytes_w = K_pad * tile_n * 2 * w_bufs
    bytes_x = tile_m * K_pad * 2 * 2
    bytes_o = tile_m * tile_n * 4 * 2
    bytes_b = tile_n * 4 * w_bufs
    vmem_limit = int(min(max(int(1.5 * (bytes_w + bytes_x + bytes_o + bytes_b))
                             + (1 << 20), 4 << 20), 64 << 20))

    cost = pl.CostEstimate(
        flops=2 * B_pad * K_pad * N_pad,
        transcendentals=B_pad * N_pad,   # one tanh per output element
        bytes_accessed=(x_p.size * 2 + w_t.size * 2 + b2d.size * 4
                        + B_pad * N_pad * 4),
    )

    out = pl.pallas_call(
        _generator_kernel,
        out_shape=jax.ShapeDtypeStruct((B_pad, N_pad), jnp.float32),
        grid_spec=pltpu.PrefetchScalarGridSpec(
            num_scalar_prefetch=0,
            grid=(grid_m, grid_n),
            in_specs=[
                pl.BlockSpec((tile_m, K_pad), lambda i, j: (i, 0)),   # x tile
                w_spec,                                               # W (resident / N-tiled)
                b_spec,                                               # bias
            ],
            out_specs=pl.BlockSpec((tile_m, tile_n), lambda i, j: (i, j)),
        ),
        compiler_params=pltpu.CompilerParams(
            dimension_semantics=("parallel", "parallel"),
            vmem_limit_bytes=vmem_limit,
        ),
        cost_estimate=cost,
    )(x_p, w_t, b2d)

    return out[:B, :L]


def _reference(x, w, b):
    # Matches the kernel's numerics: bf16 MXU operands, f32 accumulate/epilogue.
    acc = jnp.dot(x.astype(jnp.bfloat16), w.T.astype(jnp.bfloat16),
                  preferred_element_type=jnp.float32) + b[None, :]
    return jax.nn.sigmoid(acc)


if __name__ == "__main__":
    key = jax.random.PRNGKey(0)
    k_x, k_w, k_b = jax.random.split(key, 3)

    B = 8            # batch
    L = 32           # input_length

    # Deterministic parameter init (mimics nn.Linear's uniform(-1/sqrt(L), 1/sqrt(L))).
    bound = 1.0 / jnp.sqrt(jnp.float32(L))
    w = jax.random.uniform(k_w, (L, L), jnp.float32, -bound, bound)   # (out, in), torch layout
    b = jax.random.uniform(k_b, (L,), jnp.float32, -bound, bound)
    x = jax.random.normal(k_x, (B, L), jnp.float32)

    # One-time layout prep, hoisted out of the forward path.
    w_t, b2d = prepare_generator_params(w, b)

    fwd = jax.jit(generator_forward)
    y = jax.block_until_ready(fwd(x, w_t, b2d))

    y_ref = _reference(x, w, b)
    assert y.shape == (B, L)
    assert jnp.allclose(y, y_ref, atol=5e-3, rtol=5e-3), "mismatch vs reference"

    print("KERNEL_OK")
</pallas_src>

<mosaic_0001>
module attributes {stable_mosaic.version = 11 : i64} {
  func.func @_generator_kernel(%arg0: i32, %arg1: i32, %arg2: memref<16x128xbf16, #tpu.memory_space<vmem>>, %arg3: memref<128x128xbf16, #tpu.memory_space<vmem>>, %arg4: memref<1x128xf32, #tpu.memory_space<vmem>>, %arg5: memref<16x128xf32, #tpu.memory_space<vmem>>) attributes {dimension_semantics = [#tpu.dimension_semantics<parallel>, #tpu.dimension_semantics<parallel>], iteration_bounds = array<i64: 1, 1>, scalar_prefetch = 0 : i64, scratch_operands = 0 : i64, tpu.core_type = #tpu.core_type<tc>, window_params = [{transform_indices = @transform_0, window_bounds = array<i64: 16, 128>}, {pipeline_mode = #tpu.pipeline_mode<synchronous>, transform_indices = @transform_1, window_bounds = array<i64: 128, 128>}, {pipeline_mode = #tpu.pipeline_mode<synchronous>, transform_indices = @transform_2, window_bounds = array<i64: 1, 128>}, {transform_indices = @transform_3, window_bounds = array<i64: 16, 128>}]} {
    %c0 = arith.constant 0 : index
    %c0_0 = arith.constant 0 : index
    %0 = vector.load %arg2[%c0, %c0_0] : memref<16x128xbf16, #tpu.memory_space<vmem>>, vector<16x128xbf16>
    %c0_1 = arith.constant 0 : index
    %c0_2 = arith.constant 0 : index
    %1 = vector.load %arg3[%c0_1, %c0_2] : memref<128x128xbf16, #tpu.memory_space<vmem>>, vector<128x128xbf16>
    %cst = arith.constant dense<0.000000e+00> : vector<16x128xf32>
    %2 = tpu.matmul %0, %1, %cst {dimension_numbers = #tpu.dot_dimension_numbers<[1], [0], [0], [1], [0, 0, 1, 1], [], []>} : vector<16x128xbf16>, vector<128x128xbf16>, vector<16x128xf32> -> vector<16x128xf32>
    %c0_3 = arith.constant 0 : index
    %c0_4 = arith.constant 0 : index
    %3 = vector.load %arg4[%c0_3, %c0_4] : memref<1x128xf32, #tpu.memory_space<vmem>>, vector<1x128xf32>
    %4 = vector.broadcast %3 : vector<1x128xf32> to vector<16x128xf32>
    %5 = arith.addf %2, %4 : vector<16x128xf32>
    %cst_5 = arith.constant 5.000000e-01 : f32
    %6 = vector.broadcast %cst_5 : f32 to vector<16x128xf32>
    %7 = arith.mulf %6, %5 : vector<16x128xf32>
    %8 = math.tanh %7 : vector<16x128xf32>
    %cst_6 = arith.constant 5.000000e-01 : f32
    %9 = vector.broadcast %cst_6 : f32 to vector<16x128xf32>
    %10 = arith.mulf %9, %8 : vector<16x128xf32>
    %cst_7 = arith.constant 5.000000e-01 : f32
    %11 = vector.broadcast %cst_7 : f32 to vector<16x128xf32>
    %12 = arith.addf %10, %11 : vector<16x128xf32>
    %c0_8 = arith.constant 0 : index
    %c0_9 = arith.constant 0 : index
    %13 = vector.load %arg5[%c0_8, %c0_9] : memref<16x128xf32, #tpu.memory_space<vmem>>, vector<16x128xf32>
    tpu.vector_store %arg5[%c0_8, %c0_9], %12 {strides = array<i32>} : memref<16x128xf32, #tpu.memory_space<vmem>>, vector<16x128xf32>,
    return
  }
  func.func @transform_0(%arg0: i32, %arg1: i32) -> (i32, i32) {
    %c0_i32 = arith.constant 0 : i32
    %c0_i32_0 = arith.constant 0 : i32
    return %arg0, %c0_i32 : i32, i32
  }
  func.func @transform_1(%arg0: i32, %arg1: i32) -> (i32, i32) {
    %c0_i32 = arith.constant 0 : i32
    %c0_i32_0 = arith.constant 0 : i32
    return %c0_i32, %arg1 : i32, i32
  }
  func.func @transform_2(%arg0: i32, %arg1: i32) -> (i32, i32) {
    %c0_i32 = arith.constant 0 : i32
    %c0_i32_0 = arith.constant 0 : i32
    return %c0_i32, %arg1 : i32, i32
  }
  func.func @transform_3(%arg0: i32, %arg1: i32) -> (i32, i32) {
    %c0_i32 = arith.constant 0 : i32
    return %arg0, %arg1 : i32, i32
  }
}

</mosaic_0001>

<llo_original>
// kernel: generator_forward.1
$region0: #{generator_forward.1}
  #allocation0 [shape = 'u32[]', space=smem, size = 0x4, offset = 0x4, fixed_abs, tag = 'smem constant byte address 0x4 - core index']
  #allocation1 [shape = 'u32[144,128]{1,0:T(1,128)}', space=vmem, size = 0x12000, scoped, tag = 'internal scratch']
  %s0 = inlined_call_operand.vmem [shape: bf16[16,128], index: 0, kind: input, shape index: {}]
  %s1 = inlined_call_operand.hbm [shape: bf16[128,128], index: 1, kind: input, shape index: {}]
  %s2 = inlined_call_operand.vmem [shape: f32[1,128], index: 2, kind: input, shape index: {}]
  %s3 = inlined_call_operand.vmem [shape: f32[16,128], index: 3, kind: output, shape index: {}]
  %s4 = sld [smem:[#allocation0]]
  $region26: #{generator_forward.1} parent=0
    _
  %s6 = ssub.s32 1, %s4
  %s7 = scalar_select 0, %s6, %s4
  $region1: #{generator_forward.1} parent=0
    #allocation2 [shape = 'u8[32768]{0}', space=vmem, size = 0x8000, scoped, tag = 'input window, operand 1, single buffered']
    #allocation3 [shape = 's32[1]{0}', space=sflag, size = 0x4, scoped, tag = 'scoped memory for generator_forward.1']
    %8 = vsyncpa [#allocation3], 0
    // Predicated region
    $region2: #{generator_forward.1} parent=1 // pred_check
      _
    $region3: #{generator_forward.1} parent=1 // pred_check_branch
      %10 = sbr.rel (0) target = $region5
    $region4: #{generator_forward.1} parent=1 // pred_region
      _
    $region5: #{generator_forward.1} parent=1 // pred_fallthru
      _
    // Predicated region
    $region6: #{generator_forward.1} parent=1 // pred_check
      _
    $region7: #{generator_forward.1} parent=1 // pred_check_branch
      %12 = sbr.rel (0) target = $region9
    $region8: #{generator_forward.1} parent=1 // pred_region
      %s14 = ssub.s32 1024, 1024
      %15 = vsyncadd [#allocation3], %s14
      %s16 = sshll.u32 [#allocation2], 4
      %s17 = int_to_ptr.vmem [resolvable:$true] %s16
      %22 = dma.hbm_to_vmem [thread:$0]  %s1, 1024, %s17, [#allocation3], 64, 64, 4
    $region9: #{generator_forward.1} parent=1 // pred_fallthru
      _
    // Predicated region
    $region10: #{generator_forward.1} parent=1 // pred_check
      _
    $region11: #{generator_forward.1} parent=1 // pred_check_branch
      %24 = sbr.rel (0) target = $region13
    $region12: #{generator_forward.1} parent=1 // pred_region
      _
    $region13: #{generator_forward.1} parent=1 // pred_fallthru
      _
    // Predicated region
    $region14: #{generator_forward.1} parent=1 // pred_check
      _
    $region15: #{generator_forward.1} parent=1 // pred_check_branch
      %26 = sbr.rel (0) target = $region17
    $region16: #{generator_forward.1} parent=1 // pred_region
      %27 = dma.done [#allocation3], 1024
    $region17: #{generator_forward.1} parent=1 // pred_fallthru
      _
    %v29 = vld [vmem:[%s0] sm:$0xf]
    %v30 = vld [vmem:[%s0 + $0x4] sm:$0xf]
    %v31 = vld [vmem:[#allocation2] sm:$0xf]
    %v32 = vld [vmem:[#allocation2 + $0x4] sm:$0xf]
    %v33 = vld [vmem:[#allocation2 + $0x8] sm:$0xf]
    %v34 = vld [vmem:[#allocation2 + $0xc] sm:$0xf]
    %v35 = vld [vmem:[#allocation2 + $0x10] sm:$0xf]
    %v36 = vld [vmem:[#allocation2 + $0x14] sm:$0xf]
    %v37 = vld [vmem:[#allocation2 + $0x18] sm:$0xf]
    %v38 = vld [vmem:[#allocation2 + $0x1c] sm:$0xf]
    %v39 = vld [vmem:[#allocation2 + $0x20] sm:$0xf]
    %v40 = vld [vmem:[#allocation2 + $0x24] sm:$0xf]
    %v41 = vld [vmem:[#allocation2 + $0x28] sm:$0xf]
    %v42 = vld [vmem:[#allocation2 + $0x2c] sm:$0xf]
    %v43 = vld [vmem:[#allocation2 + $0x30] sm:$0xf]
    %v44 = vld [vmem:[#allocation2 + $0x34] sm:$0xf]
    %v45 = vld [vmem:[#allocation2 + $0x38] sm:$0xf]
    %v46 = vld [vmem:[#allocation2 + $0x3c] sm:$0xf]
    %v47 = vld [vmem:[%s2] sm:$0x1]
    %v49 = vlaneseq
    %v50 = vshrl.u32 %v49, 7
    %v51 = vsub.s32 0, %v50
    %v52 = vrot.slane %v47, %v51
    %v56 = vunpack.c.l.b16 %v29
    %v57 = vunpack.c.l.b16 %v30
    %v58 = vpack.c.b16 %v57, %v56
    %v76 = vunpack.c.l.b16 %v31
    %v77 = vunpack.c.l.b16 %v32
    %v78 = vunpack.c.l.b16 %v33
    %v79 = vunpack.c.l.b16 %v34
    %v80 = vunpack.c.l.b16 %v35
    %v81 = vunpack.c.l.b16 %v36
    %v82 = vunpack.c.l.b16 %v37
    %v83 = vunpack.c.l.b16 %v38
    %v84 = vunpack.c.l.b16 %v39
    %v85 = vunpack.c.l.b16 %v40
    %v86 = vunpack.c.l.b16 %v41
    %v87 = vunpack.c.l.b16 %v42
    %v88 = vunpack.c.l.b16 %v43
    %v89 = vunpack.c.l.b16 %v44
    %v90 = vunpack.c.l.b16 %v45
    %v91 = vunpack.c.l.b16 %v46
    %v92 = vpack.c.b16 %v77, %v76
    %v93 = vpack.c.b16 %v79, %v78
    %v94 = vpack.c.b16 %v81, %v80
    %v95 = vpack.c.b16 %v83, %v82
    %v96 = vpack.c.b16 %v85, %v84
    %v97 = vpack.c.b16 %v87, %v86
    %v98 = vpack.c.b16 %v89, %v88
    %v99 = vpack.c.b16 %v91, %v90
    %108 = vmatprep.subr.bf16.mxu0 0
    %109 = vmatpush1.bf16.msra.mxu0 %v92
    %110 = vmatprep.subr.bf16.mxu0 0
    %111 = vmatpush1.bf16.msra.mxu0 %v93
    %112 = vmatprep.subr.bf16.mxu0 0
    %113 = vmatpush1.bf16.msra.mxu0 %v94
    %114 = vmatprep.subr.bf16.mxu0 0
    %115 = vmatpush1.bf16.msra.mxu0 %v95
    %116 = vmatprep.subr.bf16.mxu0 0
    %117 = vmatpush1.bf16.msra.mxu0 %v96
    %118 = vmatprep.subr.bf16.mxu0 0
    %119 = vmatpush1.bf16.msra.mxu0 %v97
    %120 = vmatprep.subr.bf16.mxu0 0
    %121 = vmatpush1.bf16.msra.mxu0 %v98
    %122 = vmatprep.subr.bf16.mxu0 0
    %123 = vmatpush1.bf16.msra.mxu0 %v99
    %124 = vmatprep.subr.bf16.mxu0 0
    %125 = vmatpush1.bf16.msra.mxu0 0
    %126 = vmatprep.subr.bf16.mxu0 0
    %127 = vmatpush1.bf16.msra.mxu0 0
    %128 = vmatprep.subr.bf16.mxu0 0
    %129 = vmatpush1.bf16.msra.mxu0 0
    %130 = vmatprep.subr.bf16.mxu0 0
    %131 = vmatpush1.bf16.msra.mxu0 0
    %132 = vmatprep.subr.bf16.mxu0 0
    %133 = vmatpush1.bf16.msra.mxu0 0
    %134 = vmatprep.subr.bf16.mxu0 0
    %135 = vmatpush1.bf16.msra.mxu0 0
    %136 = vmatprep.subr.bf16.mxu0 0
    %137 = vmatpush1.bf16.msra.mxu0 0
    %138 = vmatprep.subr.bf16.mxu0 0
    %139 = vmatpush1.bf16.msra.mxu0 0
    %140 = vmatprep.mubr.bf16.mxu0 0
    %141 = vmatmul.mubr.bf16.gmra.mrb[0].mxu0 %v58
    %v142 = vpop.f32.mrb[0].mxu0
    %v143 = vadd.f32 %v52, %v142
    %v144 = vpop.f32.mrb[0].mxu0
    %v145 = vpop.f32.mrb[0].mxu0
    %v146 = vadd.f32 %v52, %v145
    %v147 = vpop.f32.mrb[0].mxu0
    %148 = vdwg.mxu0
    %v149 = vmul.f32 %v143, 0.5
    %v150 = vmul.f32 %v146, 0.5
    %v151 = vtanh.pop %v149
    %v152 = vtanh.pop %v150
    %v153 = vmul.f32 %v151, 0.5
    %v154 = vmul.f32 %v152, 0.5
    %v155 = vadd.f32 %v153, 0.5
    %v156 = vadd.f32 %v154, 0.5
    %157 = vst [vmem:[%s3] sm:$0xff] %v155
    %158 = vst [vmem:[%s3 + $0x8] sm:$0xff] %v156
    // Predicated region
    $region18: #{generator_forward.1} parent=1 // pred_check
      _
    $region19: #{generator_forward.1} parent=1 // pred_check_branch
      %160 = sbr.rel (0) target = $region21
    $region20: #{generator_forward.1} parent=1 // pred_region
      _
    $region21: #{generator_forward.1} parent=1 // pred_fallthru
      _
    // Predicated region
    $region22: #{generator_forward.1} parent=1 // pred_check
      _
    $region23: #{generator_forward.1} parent=1 // pred_check_branch
      %162 = sbr.rel (0) target = $region25
    $region24: #{generator_forward.1} parent=1 // pred_region
      _
    $region25: #{generator_forward.1} parent=1 // pred_fallthru
      _
    %163 = vsyncpa [#allocation3], 1

</llo_original>
